<compile_context>
chip_gen: v7x
topology: tpu7x:2x2x1
jax: 0.10.0
libtpu: 0.0.40
codegen_flags: <defaults>
</compile_context>

<pallas_src>
import functools

import jax
import jax.numpy as jnp
from jax.experimental import pallas as pl
from jax.experimental.pallas import tpu as pltpu


def _round_up(x: int, m: int) -> int:
    return ((x + m - 1) // m) * m


def _linear_decoder_kernel(z_ref, w_ref, lib_ref, bias_ref, scale_ref, rate_ref):
    # raw_px_scale = z @ W  (MXU, f32 accumulation).  bias is 0 on real gene
    # columns and -1e30 on padded columns so they vanish from the softmax.
    raw = jnp.dot(z_ref[...], w_ref[...], preferred_element_type=jnp.float32)
    raw = raw + bias_ref[...]  # (1, n_out_pad) broadcasts over rows

    # Numerically stable softmax along the gene (last) axis.
    m = jnp.max(raw, axis=-1, keepdims=True)
    e = jnp.exp(raw - m)
    denom = jnp.sum(e, axis=-1, keepdims=True)

    # 1/denom on the EUP; fold exp(library) * inv into one per-row scalar so the
    # epilogue is exactly two full-width broadcast multiplies.
    inv = pl.reciprocal(denom, approx=False)            # (TB, 1)
    row_rate = jnp.exp(lib_ref[...]) * inv              # (TB, 1)

    scale_ref[...] = (e * inv).astype(scale_ref.dtype)
    rate_ref[...] = (e * row_rate).astype(rate_ref.dtype)


@functools.partial(jax.jit, static_argnames=("batch_tile",))
def linear_decoder_scvi(z, weight, library, *, batch_tile: int = 256):
    """LinearDecoderSCVI forward.

    z:       (B, n_input)  f32
    weight:  (n_output, n_input)  f32   (PyTorch nn.Linear layout)
    library: (B, 1) f32

    Returns (px_scale, px_r, px_rate); px_r is None (matches the module).
    """
    B, n_in = z.shape
    n_out = weight.shape[0]
    library = library.reshape(B, 1).astype(jnp.float32)

    # ---- padding for lane-dense stores and an even batch grid -------------
    n_out_pad = _round_up(n_out, 128)

    # Pick a batch tile: multiple of 8, no larger than the (padded) batch, and
    # shrunk until the working set fits a conservative VMEM budget (<= v7x).
    tb = min(batch_tile, _round_up(B, 8))
    tb = _round_up(tb, 8)

    def _vmem_estimate(tb_):
        return 4 * (
            2 * tb_ * n_in            # z (double buffered)
            + 2 * n_in * n_out_pad    # weight
            + 2 * tb_                 # library
            + 2 * n_out_pad           # mask bias
            + 2 * 2 * tb_ * n_out_pad  # two double-buffered outputs
            + 3 * tb_ * n_out_pad     # in-kernel intermediates (raw, e, ...)
        )

    vmem_budget = 48 << 20  # conservative: fits v7x 64 MiB physical VMEM
    while _vmem_estimate(tb) > vmem_budget and tb > 8:
        tb //= 2
    tb = max(8, _round_up(tb, 8))

    b_pad = _round_up(B, tb)
    grid = (b_pad // tb,)

    # ---- pad inputs --------------------------------------------------------
    z_p = jnp.zeros((b_pad, n_in), jnp.float32).at[:B, :].set(z.astype(jnp.float32))
    lib_p = jnp.zeros((b_pad, 1), jnp.float32).at[:B, :].set(library)
    # weight comes in PyTorch layout (n_out, n_in); kernel wants (n_in, n_out_pad).
    w_p = jnp.zeros((n_in, n_out_pad), jnp.float32).at[:, :n_out].set(
        weight.astype(jnp.float32).T
    )
    # additive mask: 0 on real gene columns, -1e30 on padded columns.
    col = jnp.arange(n_out_pad)
    mask_bias = jnp.where(col < n_out, 0.0, -1e30).astype(jnp.float32)[None, :]

    out_shapes = (
        jax.ShapeDtypeStruct((b_pad, n_out_pad), jnp.float32),  # px_scale
        jax.ShapeDtypeStruct((b_pad, n_out_pad), jnp.float32),  # px_rate
    )

    cost = pl.CostEstimate(
        flops=2 * b_pad * n_in * n_out_pad,
        transcendentals=b_pad * n_out_pad + b_pad,
        bytes_accessed=4 * (b_pad * n_in + n_in * n_out_pad + b_pad
                            + 2 * b_pad * n_out_pad),
    )

    vmem_limit = int(min(max(2 * _vmem_estimate(tb), 32 << 20), 64 << 20))

    px_scale_p, px_rate_p = pl.pallas_call(
        _linear_decoder_kernel,
        out_shape=out_shapes,
        grid=grid,
        in_specs=[
            pl.BlockSpec((tb, n_in), lambda i: (i, 0)),            # z tile
            pl.BlockSpec((n_in, n_out_pad), lambda i: (0, 0)),     # weight (resident)
            pl.BlockSpec((tb, 1), lambda i: (i, 0)),               # library tile
            pl.BlockSpec((1, n_out_pad), lambda i: (0, 0)),        # pad mask bias
        ],
        out_specs=(
            pl.BlockSpec((tb, n_out_pad), lambda i: (i, 0)),
            pl.BlockSpec((tb, n_out_pad), lambda i: (i, 0)),
        ),
        compiler_params=pltpu.CompilerParams(
            dimension_semantics=("parallel",),
            vmem_limit_bytes=vmem_limit,
        ),
        cost_estimate=cost,
    )(z_p, w_p, lib_p, mask_bias)

    px_scale = px_scale_p[:B, :n_out]
    px_rate = px_rate_p[:B, :n_out]
    px_r = None
    return px_scale, px_r, px_rate


def _reference(z, weight, library):
    raw = z @ weight.T
    scale = jax.nn.softmax(raw, axis=-1)
    rate = jnp.exp(library) * scale
    return scale, rate


if __name__ == "__main__":
    # Small shapes consistent with the module: n_input (latent) = 32,
    # n_output (genes) = 200 (not a multiple of 128 -> exercises the padding),
    # batch = 10 (not a multiple of 8 -> exercises batch padding).
    B, n_input, n_output = 10, 32, 200

    key = jax.random.PRNGKey(0)
    k_z, k_w, k_lib = jax.random.split(key, 3)

    z = jax.random.normal(k_z, (B, n_input), dtype=jnp.float32)
    # PyTorch nn.Linear weight layout: (n_output, n_input).
    weight = jax.random.normal(k_w, (n_output, n_input), dtype=jnp.float32) * (
        1.0 / jnp.sqrt(n_input)
    )
    library = jax.random.normal(k_lib, (B, 1), dtype=jnp.float32)

    px_scale, px_r, px_rate = linear_decoder_scvi(z, weight, library)
    jax.block_until_ready((px_scale, px_rate))

    # correctness check against a pure-JAX reference
    ref_scale, ref_rate = _reference(z, weight, library)
    assert px_r is None
    assert px_scale.shape == (B, n_output) and px_rate.shape == (B, n_output)
    assert jnp.allclose(px_scale, ref_scale, atol=1e-5, rtol=1e-5)
    assert jnp.allclose(px_rate, ref_rate, atol=1e-5, rtol=1e-5)
    assert jnp.allclose(jnp.sum(px_scale, axis=-1), 1.0, atol=1e-5)

    print("KERNEL_OK")
</pallas_src>

<mosaic_0001>
module attributes {stable_mosaic.version = 11 : i64} {
  func.func @_linear_decoder_kernel(%arg0: i32, %arg1: memref<16x32xf32, #tpu.memory_space<vmem>>, %arg2: memref<32x256xf32, #tpu.memory_space<vmem>>, %arg3: memref<16x1xf32, #tpu.memory_space<vmem>>, %arg4: memref<1x256xf32, #tpu.memory_space<vmem>>, %arg5: memref<16x256xf32, #tpu.memory_space<vmem>>, %arg6: memref<16x256xf32, #tpu.memory_space<vmem>>) attributes {dimension_semantics = [#tpu.dimension_semantics<parallel>], iteration_bounds = array<i64: 1>, scalar_prefetch = 0 : i64, scratch_operands = 0 : i64, tpu.core_type = #tpu.core_type<tc>, window_params = [{transform_indices = @transform_0, window_bounds = array<i64: 16, 32>}, {pipeline_mode = #tpu.pipeline_mode<synchronous>, transform_indices = @transform_1, window_bounds = array<i64: 32, 256>}, {transform_indices = @transform_2, window_bounds = array<i64: 16, 1>}, {pipeline_mode = #tpu.pipeline_mode<synchronous>, transform_indices = @transform_3, window_bounds = array<i64: 1, 256>}, {transform_indices = @transform_4, window_bounds = array<i64: 16, 256>}, {transform_indices = @transform_5, window_bounds = array<i64: 16, 256>}]} {
    %c0 = arith.constant 0 : index
    %c0_0 = arith.constant 0 : index
    %0 = vector.load %arg1[%c0, %c0_0] : memref<16x32xf32, #tpu.memory_space<vmem>>, vector<16x32xf32>
    %c0_1 = arith.constant 0 : index
    %c0_2 = arith.constant 0 : index
    %1 = vector.load %arg2[%c0_1, %c0_2] : memref<32x256xf32, #tpu.memory_space<vmem>>, vector<32x256xf32>
    %cst = arith.constant dense<0.000000e+00> : vector<16x256xf32>
    %2 = tpu.matmul %0, %1, %cst {dimension_numbers = #tpu.dot_dimension_numbers<[1], [0], [0], [1], [0, 0, 1, 1], [], []>} : vector<16x32xf32>, vector<32x256xf32>, vector<16x256xf32> -> vector<16x256xf32>
    %c0_3 = arith.constant 0 : index
    %c0_4 = arith.constant 0 : index
    %3 = vector.load %arg4[%c0_3, %c0_4] : memref<1x256xf32, #tpu.memory_space<vmem>>, vector<1x256xf32>
    %4 = vector.broadcast %3 : vector<1x256xf32> to vector<16x256xf32>
    %5 = arith.addf %2, %4 : vector<16x256xf32>
    %cst_5 = arith.constant dense<0xFF800000> : vector<16xf32>
    %6 = vector.multi_reduction <maximumf>, %5, %cst_5 [1] : vector<16x256xf32> to vector<16xf32>
    %7 = vector.shape_cast %6 : vector<16xf32> to vector<16x1xf32>
    %8 = vector.broadcast %7 : vector<16x1xf32> to vector<16x256xf32>
    %9 = arith.subf %5, %8 : vector<16x256xf32>
    %10 = math.exp %9 : vector<16x256xf32>
    %cst_6 = arith.constant dense<0.000000e+00> : vector<16xf32>
    %11 = vector.multi_reduction <add>, %10, %cst_6 [1] : vector<16x256xf32> to vector<16xf32>
    %12 = vector.shape_cast %11 : vector<16xf32> to vector<16x1xf32>
    %13 = tpu.reciprocal %12 : vector<16x1xf32> -> vector<16x1xf32>
    %c0_7 = arith.constant 0 : index
    %c0_8 = arith.constant 0 : index
    %14 = vector.load %arg3[%c0_7, %c0_8] : memref<16x1xf32, #tpu.memory_space<vmem>>, vector<16x1xf32>
    %15 = math.exp %14 : vector<16x1xf32>
    %16 = arith.mulf %15, %13 : vector<16x1xf32>
    %17 = vector.broadcast %13 : vector<16x1xf32> to vector<16x256xf32>
    %18 = arith.mulf %10, %17 : vector<16x256xf32>
    %c0_9 = arith.constant 0 : index
    %c0_10 = arith.constant 0 : index
    %19 = vector.load %arg5[%c0_9, %c0_10] : memref<16x256xf32, #tpu.memory_space<vmem>>, vector<16x256xf32>
    tpu.vector_store %arg5[%c0_9, %c0_10], %18 {strides = array<i32>} : memref<16x256xf32, #tpu.memory_space<vmem>>, vector<16x256xf32>,
    %20 = vector.broadcast %16 : vector<16x1xf32> to vector<16x256xf32>
    %21 = arith.mulf %10, %20 : vector<16x256xf32>
    %c0_11 = arith.constant 0 : index
    %c0_12 = arith.constant 0 : index
    %22 = vector.load %arg6[%c0_11, %c0_12] : memref<16x256xf32, #tpu.memory_space<vmem>>, vector<16x256xf32>
    tpu.vector_store %arg6[%c0_11, %c0_12], %21 {strides = array<i32>} : memref<16x256xf32, #tpu.memory_space<vmem>>, vector<16x256xf32>,
    return
  }
  func.func @transform_0(%arg0: i32) -> (i32, i32) {
    %c0_i32 = arith.constant 0 : i32
    %c0_i32_0 = arith.constant 0 : i32
    return %arg0, %c0_i32 : i32, i32
  }
  func.func @transform_1(%arg0: i32) -> (i32, i32) {
    %c0_i32 = arith.constant 0 : i32
    %c0_i32_0 = arith.constant 0 : i32
    %c0_i32_1 = arith.constant 0 : i32
    return %c0_i32, %c0_i32_0 : i32, i32
  }
  func.func @transform_2(%arg0: i32) -> (i32, i32) {
    %c0_i32 = arith.constant 0 : i32
    %c0_i32_0 = arith.constant 0 : i32
    return %arg0, %c0_i32 : i32, i32
  }
  func.func @transform_3(%arg0: i32) -> (i32, i32) {
    %c0_i32 = arith.constant 0 : i32
    %c0_i32_0 = arith.constant 0 : i32
    %c0_i32_1 = arith.constant 0 : i32
    return %c0_i32, %c0_i32_0 : i32, i32
  }
  func.func @transform_4(%arg0: i32) -> (i32, i32) {
    %c0_i32 = arith.constant 0 : i32
    %c0_i32_0 = arith.constant 0 : i32
    return %arg0, %c0_i32 : i32, i32
  }
  func.func @transform_5(%arg0: i32) -> (i32, i32) {
    %c0_i32 = arith.constant 0 : i32
    %c0_i32_0 = arith.constant 0 : i32
    return %arg0, %c0_i32 : i32, i32
  }
}

</mosaic_0001>

<llo_original>
// kernel: linear_decoder_scvi.1
$region0: #{linear_decoder_scvi.1}
  #allocation0 [shape = 'u32[]', space=smem, size = 0x4, offset = 0x4, fixed_abs, tag = 'smem constant byte address 0x4 - core index']
  #allocation1 [shape = 'u32[144,128]{1,0:T(1,128)}', space=vmem, size = 0x12000, scoped, tag = 'internal scratch']
  %s0 = inlined_call_operand.vmem [shape: f32[16,32], index: 0, kind: input, shape index: {}]
  %s1 = inlined_call_operand.vmem [shape: f32[32,256], index: 1, kind: input, shape index: {}]
  %s2 = inlined_call_operand.vmem [shape: f32[16,1], index: 2, kind: input, shape index: {}]
  %s3 = inlined_call_operand.vmem [shape: f32[1,256], index: 3, kind: input, shape index: {}]
  %s4 = inlined_call_operand.hbm [shape: f32[16,256], index: 4, kind: output, shape index: {0}]
  %s5 = inlined_call_operand.hbm [shape: f32[16,256], index: 5, kind: output, shape index: {1}]
  %6 = xla_tuple %s4, %s5
  %s7 = sld [smem:[#allocation0]]
  $region34: #{linear_decoder_scvi.1} parent=0
    _
  %s9 = ssub.s32 1, %s7
  %s10 = scalar_select 0, %s9, %s7
  $region1: #{linear_decoder_scvi.1} parent=0
    #allocation2 [shape = 'u8[16384]{0}', space=vmem, size = 0x4000, scoped, tag = 'output window, operand 0, single buffered']
    #allocation3 [shape = 's32[1]{0}', space=sflag, size = 0x4, scoped, tag = 'scoped memory for linear_decoder_scvi.1']
    #allocation4 [shape = 'u8[16384]{0}', space=vmem, size = 0x4000, scoped, tag = 'output window, operand 1, single buffered']
    #allocation5 [shape = 's32[1]{0}', space=sflag, size = 0x4, scoped, tag = 'scoped memory for linear_decoder_scvi.1']
    %11 = vsyncpa [#allocation3], 0
    %12 = vsyncpa [#allocation5], 0
    // Predicated region
    $region2: #{linear_decoder_scvi.1} parent=1 // pred_check
      _
    $region3: #{linear_decoder_scvi.1} parent=1 // pred_check_branch
      %14 = sbr.rel (0) target = $region5
    $region4: #{linear_decoder_scvi.1} parent=1 // pred_region
      _
    $region5: #{linear_decoder_scvi.1} parent=1 // pred_fallthru
      _
    // Predicated region
    $region6: #{linear_decoder_scvi.1} parent=1 // pred_check
      _
    $region7: #{linear_decoder_scvi.1} parent=1 // pred_check_branch
      %16 = sbr.rel (0) target = $region9
    $region8: #{linear_decoder_scvi.1} parent=1 // pred_region
      _
    $region9: #{linear_decoder_scvi.1} parent=1 // pred_fallthru
      _
    // Predicated region
    $region10: #{linear_decoder_scvi.1} parent=1 // pred_check
      _
    $region11: #{linear_decoder_scvi.1} parent=1 // pred_check_branch
      %18 = sbr.rel (0) target = $region13
    $region12: #{linear_decoder_scvi.1} parent=1 // pred_region
      _
    $region13: #{linear_decoder_scvi.1} parent=1 // pred_fallthru
      _
    // Predicated region
    $region14: #{linear_decoder_scvi.1} parent=1 // pred_check
      _
    $region15: #{linear_decoder_scvi.1} parent=1 // pred_check_branch
      %20 = sbr.rel (0) target = $region17
    $region16: #{linear_decoder_scvi.1} parent=1 // pred_region
      _
    $region17: #{linear_decoder_scvi.1} parent=1 // pred_fallthru
      _
    %v21 = vld [vmem:[%s0] sm:$0xff]
    %v22 = vld [vmem:[%s0 + $0x8] sm:$0xff]
    %v23 = vld [vmem:[%s1] sm:$0xff]
    %v24 = vld [vmem:[%s1 + $0x8] sm:$0xff]
    %v25 = vld [vmem:[%s1 + $0x10] sm:$0xff]
    %v26 = vld [vmem:[%s1 + $0x18] sm:$0xff]
    %v27 = vld [vmem:[%s1 + $0x20] sm:$0xff]
    %v28 = vld [vmem:[%s1 + $0x28] sm:$0xff]
    %v29 = vld [vmem:[%s1 + $0x30] sm:$0xff]
    %v30 = vld [vmem:[%s1 + $0x38] sm:$0xff]
    %v31 = vld [vmem:[%s3] sm:$0x3]
    %v33 = vlaneseq
    %v34 = vshrl.u32 %v33, 7
    %v35 = vsub.s32 0, %v34
    %v36 = vrot.slane %v31, %v35
    %v37 = vlaneseq
    %v38 = vshrl.u32 %v37, 7
    %v39 = vsub.s32 1, %v38
    %v40 = vrot.slane %v31, %v39
    %vm43 = vcmask 261120
    %v45 = vsel %vm43, %v21, 0
    %v48 = vsel %vm43, %v22, 0
    %50 = vmatprep.subr.mxu0 %v24
    %51 = vmatpush1.msra.mxu0 %v23
    %52 = vmatprep.subr.mxu0 %v26
    %53 = vmatpush1.msra.mxu0 %v25
    %54 = vmatprep.subr.mxu0 %v28
    %55 = vmatpush1.msra.mxu0 %v27
    %56 = vmatprep.subr.mxu0 %v30
    %57 = vmatpush1.msra.mxu0 %v29
    %58 = vmatprep.subr.mxu0 0.0
    %59 = vmatpush1.msra.mxu0 0.0
    %60 = vmatprep.subr.mxu0 0.0
    %61 = vmatpush1.msra.mxu0 0.0
    %62 = vmatprep.subr.mxu0 0.0
    %63 = vmatpush1.msra.mxu0 0.0
    %64 = vmatprep.subr.mxu0 0.0
    %65 = vmatpush1.msra.mxu0 0.0
    %66 = vmatprep.subr.mxu0 0.0
    %67 = vmatpush1.msra.mxu0 0.0
    %68 = vmatprep.subr.mxu0 0.0
    %69 = vmatpush1.msra.mxu0 0.0
    %70 = vmatprep.subr.mxu0 0.0
    %71 = vmatpush1.msra.mxu0 0.0
    %72 = vmatprep.subr.mxu0 0.0
    %73 = vmatpush1.msra.mxu0 0.0
    %74 = vmatprep.subr.mxu0 0.0
    %75 = vmatpush1.msra.mxu0 0.0
    %76 = vmatprep.subr.mxu0 0.0
    %77 = vmatpush1.msra.mxu0 0.0
    %78 = vmatprep.subr.mxu0 0.0
    %79 = vmatpush1.msra.mxu0 0.0
    %80 = vmatprep.subr.mxu0 0.0
    %81 = vmatpush1.msra.mxu0 0.0
    %82 = vmatprep.subr.mxu0 0.0
    %83 = vmatpush1.msra.mxu0 0.0
    %84 = vmatprep.subr.mxu0 0.0
    %85 = vmatpush1.msra.mxu0 0.0
    %86 = vmatprep.subr.mxu0 0.0
    %87 = vmatpush1.msra.mxu0 0.0
    %88 = vmatprep.subr.mxu0 0.0
    %89 = vmatpush1.msra.mxu0 0.0
    %90 = vmatprep.subr.mxu0 0.0
    %91 = vmatpush1.msra.mxu0 0.0
    %92 = vmatprep.subr.mxu0 0.0
    %93 = vmatpush1.msra.mxu0 0.0
    %94 = vmatprep.subr.mxu0 0.0
    %95 = vmatpush1.msra.mxu0 0.0
    %96 = vmatprep.subr.mxu0 0.0
    %97 = vmatpush1.msra.mxu0 0.0
    %98 = vmatprep.subr.mxu0 0.0
    %99 = vmatpush1.msra.mxu0 0.0
    %100 = vmatprep.subr.mxu0 0.0
    %101 = vmatpush1.msra.mxu0 0.0
    %102 = vmatprep.subr.mxu0 0.0
    %103 = vmatpush1.msra.mxu0 0.0
    %104 = vmatprep.subr.mxu0 0.0
    %105 = vmatpush1.msra.mxu0 0.0
    %106 = vmatprep.subr.mxu0 0.0
    %107 = vmatpush1.msra.mxu0 0.0
    %108 = vmatprep.subr.mxu0 0.0
    %109 = vmatpush1.msra.mxu0 0.0
    %110 = vmatprep.subr.mxu0 0.0
    %111 = vmatpush1.msra.mxu0 0.0
    %112 = vmatprep.subr.mxu0 0.0
    %113 = vmatpush1.msra.mxu0 0.0
    %114 = vmatprep.mubr.f32.mxu0 0.0
    %115 = vmatmul.mubr.f32.gmra.mrb[0].mxu0 %v45
    %v116 = vpop.f32.mrb[0].mxu0
    %v117 = vadd.f32 %v36, %v116
    %v118 = vpop.f32.mrb[0].mxu0
    %v119 = vadd.f32 %v40, %v118
    %120 = vmatprep.mubr.f32.mxu0 0.0
    %121 = vmatmul.mubr.f32.gmra.mrb[0].mxu0 %v48
    %v122 = vpop.f32.mrb[0].mxu0
    %v123 = vadd.f32 %v36, %v122
    %v124 = vpop.f32.mrb[0].mxu0
    %v125 = vadd.f32 %v40, %v124
    %126 = vdwg.mxu0
    %v127 = vmax.f32 %v117, %v119
    %128 = vmax.xlane.f32.xlu0 %v127
    %v129 = vpop.xlane.xlu0 %128
    %v130 = vmax.f32 %v123, %v125
    %131 = vmax.xlane.f32.xlu0 %v130
    %v132 = vpop.xlane.xlu0 %131
    %v133 = vsub.f32 %v117, %v129
    %v134 = vsub.f32 %v119, %v129
    %v135 = vsub.f32 %v123, %v132
    %v136 = vsub.f32 %v125, %v132
    %v137 = vmul.f32 %v133, 1.442695
    %v138 = vpow.pop %v137
    %v139 = vmul.f32 %v134, 1.442695
    %v140 = vpow.pop %v139
    %v141 = vmul.f32 %v135, 1.442695
    %v142 = vpow.pop %v141
    %v143 = vmul.f32 %v136, 1.442695
    %v144 = vpow.pop %v143
    %v145 = vadd.f32 %v138, %v140
    %146 = vadd.xlane.f32.xlu0 %v145
    %v147 = vpop.xlane.xlu0 %146
    %v148 = vadd.f32 %v142, %v144
    %149 = vadd.xlane.f32.xlu0 %v148
    %v150 = vpop.xlane.xlu0 %149
    %v151 = vrcp.pop %v147
    %v152 = vrcp.pop %v150
    %v153 = vld [vmem:[%s2] sm:$0xff]
    %v154 = vld [vmem:[%s2 + $0x8] sm:$0xff]
    %v155 = vmul.f32 %v153, 1.442695
    %v156 = vpow.pop %v155
    %v157 = vmul.f32 %v154, 1.442695
    %v158 = vpow.pop %v157
    %v159 = vmul.f32 %v156, %v151
    %v160 = vmul.f32 %v158, %v152
    %v161 = vmul.f32 %v138, %v151
    %v162 = vmul.f32 %v140, %v151
    %v163 = vmul.f32 %v142, %v152
    %v164 = vmul.f32 %v144, %v152
    %165 = vst [vmem:[#allocation2] sm:$0xff] %v161
    %166 = vst [vmem:[#allocation2 + $0x8] sm:$0xff] %v162
    %167 = vst [vmem:[#allocation2 + $0x10] sm:$0xff] %v163
    %168 = vst [vmem:[#allocation2 + $0x18] sm:$0xff] %v164
    %170 = vset.pattern.permute.xlu0 0
    %171 = vperm.xlu0 %170, %v159
    %v172 = vpop.permute.xlu0 %171
    %175 = vset.pattern.permute.xlu0 0
    %176 = vperm.xlu0 %175, %v160
    %v177 = vpop.permute.xlu0 %176
    %v179 = vmul.f32 %v138, %v172
    %v180 = vmul.f32 %v140, %v172
    %v181 = vmul.f32 %v142, %v177
    %v182 = vmul.f32 %v144, %v177
    %183 = vst [vmem:[#allocation4] sm:$0xff] %v179
    %184 = vst [vmem:[#allocation4 + $0x8] sm:$0xff] %v180
    %185 = vst [vmem:[#allocation4 + $0x10] sm:$0xff] %v181
    %186 = vst [vmem:[#allocation4 + $0x18] sm:$0xff] %v182
    // Predicated region
    $region18: #{linear_decoder_scvi.1} parent=1 // pred_check
      _
    $region19: #{linear_decoder_scvi.1} parent=1 // pred_check_branch
      %188 = sbr.rel (0) target = $region21
    $region20: #{linear_decoder_scvi.1} parent=1 // pred_region
      %s190 = ssub.s32 512, 512
      %191 = vsyncadd [#allocation3], %s190
      %s192 = sshll.u32 [#allocation2], 4
      %s193 = int_to_ptr.vmem [resolvable:$true] %s192
      %198 = dma.vmem_to_hbm [thread:$0]  %s193, 512, %s4, [#allocation3], 256, 256, 16
    $region21: #{linear_decoder_scvi.1} parent=1 // pred_fallthru
      _
    // Predicated region
    $region22: #{linear_decoder_scvi.1} parent=1 // pred_check
      _
    $region23: #{linear_decoder_scvi.1} parent=1 // pred_check_branch
      %200 = sbr.rel (0) target = $region25
    $region24: #{linear_decoder_scvi.1} parent=1 // pred_region
      %s202 = ssub.s32 512, 512
      %203 = vsyncadd [#allocation5], %s202
      %s204 = sshll.u32 [#allocation4], 4
      %s205 = int_to_ptr.vmem [resolvable:$true] %s204
      %210 = dma.vmem_to_hbm [thread:$0]  %s205, 512, %s5, [#allocation5], 256, 256, 16
    $region25: #{linear_decoder_scvi.1} parent=1 // pred_fallthru
      _
    // Predicated region
    $region26: #{linear_decoder_scvi.1} parent=1 // pred_check
      _
    $region27: #{linear_decoder_scvi.1} parent=1 // pred_check_branch
      %212 = sbr.rel (0) target = $region29
    $region28: #{linear_decoder_scvi.1} parent=1 // pred_region
      %213 = dma.done [#allocation3], 512
    $region29: #{linear_decoder_scvi.1} parent=1 // pred_fallthru
      _
    // Predicated region
    $region30: #{linear_decoder_scvi.1} parent=1 // pred_check
      _
    $region31: #{linear_decoder_scvi.1} parent=1 // pred_check_branch
      %215 = sbr.rel (0) target = $region33
    $region32: #{linear_decoder_scvi.1} parent=1 // pred_region
      %216 = dma.done [#allocation5], 512
    $region33: #{linear_decoder_scvi.1} parent=1 // pred_fallthru
      _
    %217 = vsyncpa [#allocation3], 1
    %218 = vsyncpa [#allocation5], 1

</llo_original>
